<compile_context>
chip_gen: v5e
topology: v5e:2x2
jax: 0.10.0
libtpu: 0.0.40
codegen_flags: <defaults>
</compile_context>

<pallas_src>
import functools
import math

import jax
import jax.numpy as jnp
from jax import lax
from jax.experimental import pallas as pl
from jax.experimental.pallas import tpu as pltpu


# Large finite negative for the causal mask: exp(mask - m) underflows to 0 in
# f32, and (unlike -inf) a fully-masked row would produce zeros instead of NaNs.
_MASK_VALUE = -0.7 * float(jnp.finfo(jnp.float32).max)


def head_kernel(x_ref, wq_ref, wk_ref, wv_ref, o_ref, *, scale):
    # x_ref: (Bblk, T, C); w*_ref: (C, H); o_ref: (Bblk, T, H)
    Bblk, T, C = x_ref.shape
    H = wq_ref.shape[1]

    # Cast inside the kernel (no wrapper-side astype pass over x).
    x = x_ref[...].astype(jnp.bfloat16)                 # (Bblk, T, C)
    x2d = x.reshape(Bblk * T, C)                        # tall-M matmul operand

    wq = wq_ref[...].astype(jnp.bfloat16)
    wk = wk_ref[...].astype(jnp.bfloat16)
    wv = wv_ref[...].astype(jnp.bfloat16)

    # Three lane-aligned 2D projections with M = Bblk*T; x2d stays vreg-resident
    # across the three MXU pushes. bf16 operands, f32 accumulation.
    q = jnp.dot(x2d, wq, preferred_element_type=jnp.float32)   # (Bblk*T, H) f32
    k = jnp.dot(x2d, wk, preferred_element_type=jnp.float32)
    v = jnp.dot(x2d, wv, preferred_element_type=jnp.float32)

    q = q.reshape(Bblk, T, H).astype(jnp.bfloat16)
    k = k.reshape(Bblk, T, H).astype(jnp.bfloat16)
    v = v.reshape(Bblk, T, H).astype(jnp.bfloat16)

    # scores = (q @ k^T) * head_size**-0.5 — contraction over the head dim.
    # At H = 16 any implied k relayout is a single tiny tile (accepted while
    # this stays a single-head kernel).
    s = lax.dot_general(
        q, k,
        dimension_numbers=(((2,), (2,)), ((0,), (0,))),
        preferred_element_type=jnp.float32) * scale             # (Bblk, T, T) f32

    # Causal mask (tril == 0 -> large negative). Diagonal always unmasked.
    row = lax.broadcasted_iota(jnp.int32, (T, T), 0)
    col = lax.broadcasted_iota(jnp.int32, (T, T), 1)
    s = jnp.where((col <= row)[None], s, _MASK_VALUE)

    # Softmax in f32; EUP approximate reciprocal for the denominator (separate
    # issue slot, ~free; rows sum to 1 +- ~2^-12).
    m = jnp.max(s, axis=-1, keepdims=True)
    e = jnp.exp(s - m)
    denom = jnp.sum(e, axis=-1, keepdims=True)
    p = (e * pl.reciprocal(denom, approx=True)).astype(jnp.bfloat16)

    # TODO(synk): attention-weight dropout is identity here (eval-mode
    # semantics); training mode would use pltpu.prng_seed + prng_random_bits.

    out = lax.dot_general(
        p, v,
        dimension_numbers=(((2,), (1,)), ((0,), (0,))),
        preferred_element_type=jnp.float32)                     # (Bblk, T, H) f32

    # H = 16 output lanes is fixed by the single-head contract (lane-sparse
    # store); a lane-dense store needs multi-head fusion at a higher level.
    o_ref[...] = out.astype(o_ref.dtype)


def _vmem_estimate(bb, T, C, H):
    """Conservative per-block VMEM estimate (bytes)."""
    x_bytes = 2 * bb * T * C * 4            # double-buffered f32 input block
    o_bytes = 2 * bb * T * H * 4            # double-buffered output block
    scores = bb * T * T * (4 + 4 + 2)       # s (f32), e (f32), p (bf16)
    qkv = 3 * bb * T * H * (4 + 2)          # f32 + bf16 copies of q/k/v
    w_bytes = 3 * C * H * (4 + 2) * 2       # weights (f32 in, bf16 cast, 2 bufs)
    return x_bytes + o_bytes + scores + qkv + w_bytes


def _pick_block_b(B, T, C, H, vmem_budget_bytes):
    """Largest batch-block keeping >= min(B, 4) grid steps (pipelining depth on
    1-TC chips, >= 2 steps per core on 2-TC chips) within the VMEM budget."""
    min_steps = min(B, 4)
    best = 1
    for d in range(1, B + 1):
        if B % d == 0 and B // d >= min_steps and _vmem_estimate(d, T, C, H) <= vmem_budget_bytes:
            best = max(best, d)
    return best


def head_forward(x, wk, wq, wv, *, block_b=None, out_dtype=None,
                 vmem_budget_bytes=24 << 20):
    """x: (B, T, C); wk/wq/wv: (C, H). Returns (B, T, H) (dropout = identity)."""
    B, T, C = x.shape
    H = wk.shape[1]
    out_dtype = x.dtype if out_dtype is None else out_dtype

    if block_b is None:
        block_b = _pick_block_b(B, T, C, H, vmem_budget_bytes)
    assert B % block_b == 0, "block_b must divide the batch"

    grid = (B // block_b,)

    # Explicit scoped-VMEM limit: defaults are 16/32/32 MiB (v5e/v6e/v7x); give
    # the estimate generous slack but stay well under v7x's 64 MiB physical.
    vmem_limit = int(min(max(4 * _vmem_estimate(block_b, T, C, H), 16 << 20),
                         48 << 20))

    return pl.pallas_call(
        functools.partial(head_kernel, scale=H ** -0.5),
        out_shape=jax.ShapeDtypeStruct((B, T, H), out_dtype),
        grid_spec=pltpu.PrefetchScalarGridSpec(
            num_scalar_prefetch=0,
            grid=grid,
            in_specs=[
                pl.BlockSpec((block_b, T, C), lambda b: (b, 0, 0)),
                # Constant index_map: each weight is DMA'd once and stays
                # VMEM-resident across grid steps.
                pl.BlockSpec((C, H), lambda b: (0, 0)),
                pl.BlockSpec((C, H), lambda b: (0, 0)),
                pl.BlockSpec((C, H), lambda b: (0, 0)),
            ],
            out_specs=pl.BlockSpec((block_b, T, H), lambda b: (b, 0, 0)),
        ),
        compiler_params=pltpu.CompilerParams(
            dimension_semantics=("parallel",),
            vmem_limit_bytes=vmem_limit,
        ),
    )(x, wq, wk, wv)


def reference_forward(x, wk, wq, wv):
    """Plain-JAX f32 reference mirroring the PyTorch forward (dropout = identity)."""
    k = x @ wk
    q = x @ wq
    v = x @ wv
    w = (q @ jnp.swapaxes(k, -2, -1)) * (k.shape[-1] ** -0.5)
    T = x.shape[1]
    tril = jnp.tril(jnp.ones((T, T)))
    w = jnp.where(tril == 0, -jnp.inf, w)
    w = jax.nn.softmax(w, axis=-1)
    return w @ v


if __name__ == "__main__":
    # Small shapes consistent with the module's forward:
    # batch=2, block_size (seq) = 8, n_embed = 32, head_size = 16.
    B, T, C, H = 2, 8, 32, 16
    dropout_rate = 0.1  # unused at eval time

    key = jax.random.PRNGKey(0)
    kx, kk, kq, kv = jax.random.split(key, 4)

    x = jax.random.normal(kx, (B, T, C), dtype=jnp.float32)

    # Deterministic "Linear(n_embed, head_size, bias=False)" weights, stored
    # transposed as (n_embed, head_size) so the kernel computes x @ W.
    bound = 1.0 / math.sqrt(C)
    wk = jax.random.uniform(kk, (C, H), minval=-bound, maxval=bound, dtype=jnp.float32)
    wq = jax.random.uniform(kq, (C, H), minval=-bound, maxval=bound, dtype=jnp.float32)
    wv = jax.random.uniform(kv, (C, H), minval=-bound, maxval=bound, dtype=jnp.float32)

    out = jax.block_until_ready(head_forward(x, wk, wq, wv))
    ref = reference_forward(x, wk, wq, wv)

    assert out.shape == (B, T, H)
    # bf16 MXU operands (f32 accumulate) + approx reciprocal vs pure-f32
    # reference -> loosened tolerance.
    err = float(jnp.max(jnp.abs(out - ref)))
    assert jnp.allclose(out, ref, atol=5e-2, rtol=5e-2), f"max abs err {err}"

    print("KERNEL_OK")
</pallas_src>

<mosaic_0001>
module attributes {stable_mosaic.version = 11 : i64} {
  func.func @head_kernel(%arg0: i32, %arg1: memref<1x8x32xf32, #tpu.memory_space<vmem>>, %arg2: memref<32x16xf32, #tpu.memory_space<vmem>>, %arg3: memref<32x16xf32, #tpu.memory_space<vmem>>, %arg4: memref<32x16xf32, #tpu.memory_space<vmem>>, %arg5: memref<1x8x16xf32, #tpu.memory_space<vmem>>) attributes {dimension_semantics = [#tpu.dimension_semantics<parallel>], iteration_bounds = array<i64: 2>, scalar_prefetch = 0 : i64, scratch_operands = 0 : i64, tpu.core_type = #tpu.core_type<tc>, window_params = [{transform_indices = @transform_0, window_bounds = array<i64: 1, 8, 32>}, {pipeline_mode = #tpu.pipeline_mode<synchronous>, transform_indices = @transform_1, window_bounds = array<i64: 32, 16>}, {pipeline_mode = #tpu.pipeline_mode<synchronous>, transform_indices = @transform_2, window_bounds = array<i64: 32, 16>}, {pipeline_mode = #tpu.pipeline_mode<synchronous>, transform_indices = @transform_3, window_bounds = array<i64: 32, 16>}, {transform_indices = @transform_4, window_bounds = array<i64: 1, 8, 16>}]} {
    %c0 = arith.constant 0 : index
    %c0_0 = arith.constant 0 : index
    %c0_1 = arith.constant 0 : index
    %0 = vector.load %arg1[%c0, %c0_0, %c0_1] : memref<1x8x32xf32, #tpu.memory_space<vmem>>, vector<1x8x32xf32>
    %1 = arith.truncf %0 : vector<1x8x32xf32> to vector<1x8x32xbf16>
    %2 = vector.shape_cast %1 : vector<1x8x32xbf16> to vector<8x32xbf16>
    %c0_2 = arith.constant 0 : index
    %c0_3 = arith.constant 0 : index
    %3 = vector.load %arg2[%c0_2, %c0_3] : memref<32x16xf32, #tpu.memory_space<vmem>>, vector<32x16xf32>
    %4 = arith.truncf %3 : vector<32x16xf32> to vector<32x16xbf16>
    %c0_4 = arith.constant 0 : index
    %c0_5 = arith.constant 0 : index
    %5 = vector.load %arg3[%c0_4, %c0_5] : memref<32x16xf32, #tpu.memory_space<vmem>>, vector<32x16xf32>
    %6 = arith.truncf %5 : vector<32x16xf32> to vector<32x16xbf16>
    %c0_6 = arith.constant 0 : index
    %c0_7 = arith.constant 0 : index
    %7 = vector.load %arg4[%c0_6, %c0_7] : memref<32x16xf32, #tpu.memory_space<vmem>>, vector<32x16xf32>
    %8 = arith.truncf %7 : vector<32x16xf32> to vector<32x16xbf16>
    %cst = arith.constant dense<0.000000e+00> : vector<8x16xf32>
    %9 = tpu.matmul %2, %4, %cst {dimension_numbers = #tpu.dot_dimension_numbers<[1], [0], [0], [1], [0, 0, 1, 1], [], []>} : vector<8x32xbf16>, vector<32x16xbf16>, vector<8x16xf32> -> vector<8x16xf32>
    %cst_8 = arith.constant dense<0.000000e+00> : vector<8x16xf32>
    %10 = tpu.matmul %2, %6, %cst_8 {dimension_numbers = #tpu.dot_dimension_numbers<[1], [0], [0], [1], [0, 0, 1, 1], [], []>} : vector<8x32xbf16>, vector<32x16xbf16>, vector<8x16xf32> -> vector<8x16xf32>
    %cst_9 = arith.constant dense<0.000000e+00> : vector<8x16xf32>
    %11 = tpu.matmul %2, %8, %cst_9 {dimension_numbers = #tpu.dot_dimension_numbers<[1], [0], [0], [1], [0, 0, 1, 1], [], []>} : vector<8x32xbf16>, vector<32x16xbf16>, vector<8x16xf32> -> vector<8x16xf32>
    %12 = vector.shape_cast %9 : vector<8x16xf32> to vector<1x8x16xf32>
    %13 = arith.truncf %12 : vector<1x8x16xf32> to vector<1x8x16xbf16>
    %14 = vector.shape_cast %10 : vector<8x16xf32> to vector<1x8x16xf32>
    %15 = arith.truncf %14 : vector<1x8x16xf32> to vector<1x8x16xbf16>
    %16 = vector.shape_cast %11 : vector<8x16xf32> to vector<1x8x16xf32>
    %17 = arith.truncf %16 : vector<1x8x16xf32> to vector<1x8x16xbf16>
    %cst_10 = arith.constant dense<0.000000e+00> : vector<1x8x8xf32>
    %18 = tpu.matmul %13, %15, %cst_10 {dimension_numbers = #tpu.dot_dimension_numbers<[2], [2], [1], [1], [0, 0, 0, 1, 1, 1], [0], [0]>} : vector<1x8x16xbf16>, vector<1x8x16xbf16>, vector<1x8x8xf32> -> vector<1x8x8xf32>
    %cst_11 = arith.constant 2.500000e-01 : f32
    %19 = vector.broadcast %cst_11 : f32 to vector<1x8x8xf32>
    %20 = arith.mulf %18, %19 : vector<1x8x8xf32>
    %21 = tpu.iota {dimensions = array<i32: 0>} : vector<8x8xi32>
    %22 = tpu.iota {dimensions = array<i32: 1>} : vector<8x8xi32>
    %23 = arith.cmpi sle, %22, %21 : vector<8x8xi32>
    %24 = vector.shape_cast %23 : vector<8x8xi1> to vector<1x8x8xi1>
    %cst_12 = arith.constant -2.38197633E+38 : f32
    %25 = vector.broadcast %cst_12 : f32 to vector<1x8x8xf32>
    %26 = arith.select %24, %20, %25 : vector<1x8x8xi1>, vector<1x8x8xf32>
    %cst_13 = arith.constant dense<0xFF800000> : vector<1x8xf32>
    %27 = vector.multi_reduction <maximumf>, %26, %cst_13 [2] : vector<1x8x8xf32> to vector<1x8xf32>
    %28 = vector.shape_cast %27 : vector<1x8xf32> to vector<1x8x1xf32>
    %29 = vector.broadcast %28 : vector<1x8x1xf32> to vector<1x8x8xf32>
    %30 = arith.subf %26, %29 : vector<1x8x8xf32>
    %31 = math.exp %30 : vector<1x8x8xf32>
    %cst_14 = arith.constant dense<0.000000e+00> : vector<1x8xf32>
    %32 = vector.multi_reduction <add>, %31, %cst_14 [2] : vector<1x8x8xf32> to vector<1x8xf32>
    %33 = vector.shape_cast %32 : vector<1x8xf32> to vector<1x8x1xf32>
    %34 = tpu.reciprocal %33 {approx = true} : vector<1x8x1xf32> -> vector<1x8x1xf32>
    %35 = vector.broadcast %34 : vector<1x8x1xf32> to vector<1x8x8xf32>
    %36 = arith.mulf %31, %35 : vector<1x8x8xf32>
    %37 = arith.truncf %36 : vector<1x8x8xf32> to vector<1x8x8xbf16>
    %cst_15 = arith.constant dense<0.000000e+00> : vector<1x8x16xf32>
    %38 = tpu.matmul %37, %17, %cst_15 {dimension_numbers = #tpu.dot_dimension_numbers<[2], [1], [1], [2], [0, 0, 0, 1, 1, 2], [0], [0]>} : vector<1x8x8xbf16>, vector<1x8x16xbf16>, vector<1x8x16xf32> -> vector<1x8x16xf32>
    %c0_16 = arith.constant 0 : index
    %c0_17 = arith.constant 0 : index
    %c0_18 = arith.constant 0 : index
    %39 = vector.load %arg5[%c0_16, %c0_17, %c0_18] : memref<1x8x16xf32, #tpu.memory_space<vmem>>, vector<1x8x16xf32>
    tpu.vector_store %arg5[%c0_16, %c0_17, %c0_18], %38 {strides = array<i32>} : memref<1x8x16xf32, #tpu.memory_space<vmem>>, vector<1x8x16xf32>,
    return
  }
  func.func @transform_0(%arg0: i32) -> (i32, i32, i32) {
    %c0_i32 = arith.constant 0 : i32
    %c0_i32_0 = arith.constant 0 : i32
    %c0_i32_1 = arith.constant 0 : i32
    return %arg0, %c0_i32, %c0_i32_0 : i32, i32, i32
  }
  func.func @transform_1(%arg0: i32) -> (i32, i32) {
    %c0_i32 = arith.constant 0 : i32
    %c0_i32_0 = arith.constant 0 : i32
    %c0_i32_1 = arith.constant 0 : i32
    return %c0_i32, %c0_i32_0 : i32, i32
  }
  func.func @transform_2(%arg0: i32) -> (i32, i32) {
    %c0_i32 = arith.constant 0 : i32
    %c0_i32_0 = arith.constant 0 : i32
    %c0_i32_1 = arith.constant 0 : i32
    return %c0_i32, %c0_i32_0 : i32, i32
  }
  func.func @transform_3(%arg0: i32) -> (i32, i32) {
    %c0_i32 = arith.constant 0 : i32
    %c0_i32_0 = arith.constant 0 : i32
    %c0_i32_1 = arith.constant 0 : i32
    return %c0_i32, %c0_i32_0 : i32, i32
  }
  func.func @transform_4(%arg0: i32) -> (i32, i32, i32) {
    %c0_i32 = arith.constant 0 : i32
    %c0_i32_0 = arith.constant 0 : i32
    %c0_i32_1 = arith.constant 0 : i32
    return %arg0, %c0_i32, %c0_i32_0 : i32, i32, i32
  }
}

</mosaic_0001>

<llo_original>
// kernel: tpu_custom_call.1
$region0: #{tpu_custom_call.1}
  #allocation0 [shape = 'u32[]', space=smem, size = 0x4, offset = 0x4, fixed_abs, tag = 'smem constant byte address 0x4 - core index']
  #allocation1 [shape = 'u32[72,128]{1,0:T(1,128)}', space=vmem, size = 0x9000, scoped, tag = 'internal scratch']
  %s0 = inlined_call_operand.vmem [shape: f32[2,8,32], index: 0, kind: input, shape index: {}]
  %s1 = inlined_call_operand.vmem [shape: f32[32,16], index: 1, kind: input, shape index: {}]
  %s2 = inlined_call_operand.vmem [shape: f32[32,16], index: 2, kind: input, shape index: {}]
  %s3 = inlined_call_operand.vmem [shape: f32[32,16], index: 3, kind: input, shape index: {}]
  %s4 = inlined_call_operand.hbm [shape: f32[2,8,16], index: 4, kind: output, shape index: {}]
  %s5 = sld [smem:[#allocation0]]
  $region49: #{tpu_custom_call.1} parent=0
    _
  %s7 = ssub.s32 1, %s5
  %s8 = scalar_select 0, %s7, %s5
  $region1: #{tpu_custom_call.1} parent=0
    #allocation2 [shape = 'u8[8192]{0}', space=vmem, size = 0x2000, scoped, tag = 'output window, operand 0']
    #allocation3 [shape = 's32[2]{0}', space=sflag, size = 0x8, scoped, tag = 'scoped memory for tpu_custom_call.1']
    %9 = vsyncpa [#allocation3], 0
    %s10 = scalar_lea.sflag [#allocation3], 1
    %11 = vsyncpa %s10, 0
    loop: start=0, step=1, limit=4
    $region2: #{tpu_custom_call.1} parent=1 // loop_pre_header
      _
    $region3: #{tpu_custom_call.1} parent=1 // loop_header
      %s13 = sphi 0, %s17
      %p14 = scmp.ge.s32.totalorder %s13, 4
      %s23 = sphi 0, %s25
      %s26 = sphi 0, %s23
      %s27 = sphi 0, %s26
      %s43 = sphi 0, %s27
      %s47 = sphi 0, %s47
      %s49 = sphi 0, %s47
      %s50 = sphi 0, %s49
      %s64 = sphi 0, %s50
      %s68 = sphi 0, %s68
      %s70 = sphi 0, %s68
      %s71 = sphi 0, %s70
      %s85 = sphi 0, %s71
      %s89 = sphi 0, %s89
      %s91 = sphi 0, %s89
      %s92 = sphi 0, %s91
      %s106 = sphi 0, %s92
      %s112 = sphi 0, %s114
      %s115 = sphi 0, %s112
      %s116 = sphi 0, %s115
      %s132 = sphi 0, %s116
    $region4: #{tpu_custom_call.1} parent=1 // loop_header_branch
      %16 = sbr.rel (%p14) target = $region8
    $region5: #{tpu_custom_call.1} parent=1 // loop_body
      %s18 = ssub.s32 %s13, 1
      %s19 = ssub.s32 %s13, 2
      %s20 = sadd.s32 %s13, 1
      %s21 = ssub.s32 %s13, %s20
      %p22 = scmp.eq.s32.totalorder %s21, 0
      %s24 = sadd.s32 %s23, 1
      %s25 = scalar_select %p22, %s23, %s24
      %p28 = pneg %p22
      %p29 = scmp.eq.s32.totalorder %s13, 1
      %p30 = por %p28, %p29
      %p31 = scmp.ne.s32.totalorder %s23, %s26
      %p32 = scmp.eq.s32.totalorder %s13, 0
      %p33 = por %p31, %p32
      %p34 = scmp.ne.s32.totalorder %s23, %s26
      %p35 = scmp.eq.s32.totalorder %s18, 1
      %p36 = por %p34, %p35
      %p37 = scmp.ne.s32.totalorder %s26, %s27
      %p38 = scmp.eq.s32.totalorder %s18, 0
      %p39 = por %p37, %p38
      %p40 = scmp.ne.s32.totalorder %s26, %s27
      %p41 = scmp.eq.s32.totalorder %s19, 1
      %p42 = por %p40, %p41
      %p44 = scmp.ne.s32.totalorder %s27, %s43
      %p45 = scmp.eq.s32.totalorder %s19, 0
      %p46 = por %p44, %p45
      %s48 = sadd.s32 %s47, 1
      %p51 = scmp.eq.s32.totalorder %s13, 1
      %p52 = scmp.ne.s32.totalorder %s47, %s49
      %p53 = scmp.eq.s32.totalorder %s13, 0
      %p54 = por %p52, %p53
      %p55 = scmp.ne.s32.totalorder %s47, %s49
      %p56 = scmp.eq.s32.totalorder %s18, 1
      %p57 = por %p55, %p56
      %p58 = scmp.ne.s32.totalorder %s49, %s50
      %p59 = scmp.eq.s32.totalorder %s18, 0
      %p60 = por %p58, %p59
      %p61 = scmp.ne.s32.totalorder %s49, %s50
      %p62 = scmp.eq.s32.totalorder %s19, 1
      %p63 = por %p61, %p62
      %p65 = scmp.ne.s32.totalorder %s50, %s64
      %p66 = scmp.eq.s32.totalorder %s19, 0
      %p67 = por %p65, %p66
      %s69 = sadd.s32 %s68, 1
      %p72 = scmp.eq.s32.totalorder %s13, 1
      %p73 = scmp.ne.s32.totalorder %s68, %s70
      %p74 = scmp.eq.s32.totalorder %s13, 0
      %p75 = por %p73, %p74
      %p76 = scmp.ne.s32.totalorder %s68, %s70
      %p77 = scmp.eq.s32.totalorder %s18, 1
      %p78 = por %p76, %p77
      %p79 = scmp.ne.s32.totalorder %s70, %s71
      %p80 = scmp.eq.s32.totalorder %s18, 0
      %p81 = por %p79, %p80
      %p82 = scmp.ne.s32.totalorder %s70, %s71
      %p83 = scmp.eq.s32.totalorder %s19, 1
      %p84 = por %p82, %p83
      %p86 = scmp.ne.s32.totalorder %s71, %s85
      %p87 = scmp.eq.s32.totalorder %s19, 0
      %p88 = por %p86, %p87
      %s90 = sadd.s32 %s89, 1
      %p93 = scmp.eq.s32.totalorder %s13, 1
      %p94 = scmp.ne.s32.totalorder %s89, %s91
      %p95 = scmp.eq.s32.totalorder %s13, 0
      %p96 = por %p94, %p95
      %p97 = scmp.ne.s32.totalorder %s89, %s91
      %p98 = scmp.eq.s32.totalorder %s18, 1
      %p99 = por %p97, %p98
      %p100 = scmp.ne.s32.totalorder %s91, %s92
      %p101 = scmp.eq.s32.totalorder %s18, 0
      %p102 = por %p100, %p101
      %p103 = scmp.ne.s32.totalorder %s91, %s92
      %p104 = scmp.eq.s32.totalorder %s19, 1
      %p105 = por %p103, %p104
      %p107 = scmp.ne.s32.totalorder %s92, %s106
      %p108 = scmp.eq.s32.totalorder %s19, 0
      %p109 = por %p107, %p108
      %s110 = ssub.s32 %s13, %s20
      %p111 = scmp.eq.s32.totalorder %s110, 0
      %s113 = sadd.s32 %s112, 1
      %s114 = scalar_select %p111, %s112, %s113
      %p117 = pneg %p111
      %p118 = scmp.eq.s32.totalorder %s13, 1
      %p119 = por %p117, %p118
      %p120 = scmp.ne.s32.totalorder %s112, %s115
      %p121 = scmp.eq.s32.totalorder %s13, 0
      %p122 = por %p120, %p121
      %p123 = scmp.ne.s32.totalorder %s112, %s115
      %p124 = scmp.eq.s32.totalorder %s18, 1
      %p125 = por %p123, %p124
      %p126 = scmp.ne.s32.totalorder %s115, %s116
      %p127 = scmp.eq.s32.totalorder %s18, 0
      %p128 = por %p126, %p127
      %p129 = scmp.ne.s32.totalorder %s115, %s116
      %p130 = scmp.eq.s32.totalorder %s19, 1
      %p131 = por %p129, %p130
      %p133 = scmp.ne.s32.totalorder %s116, %s132
      %p134 = scmp.eq.s32.totalorder %s19, 0
      %p135 = por %p133, %p134
      %p136 = scmp.le.s32.totalorder 1, %s13
      %p137 = scmp.lt.s32.totalorder %s13, 3
      %p138 = pnand %p136, %p137
      %p139 = pneg %p138
      // Predicated region
      $region9: #{tpu_custom_call.1} parent=5 // pred_check
        _
      $region10: #{tpu_custom_call.1} parent=5 // pred_check_branch
        %141 = sbr.rel (%p138) target = $region12
      $region11: #{tpu_custom_call.1} parent=5 // pred_region
        %s142 = ssub.s32 %s13, 1
        // Predicated region
        $region13: #{tpu_custom_call.1} parent=11 // pred_check
          %p143 = pneg %p60
        $region14: #{tpu_custom_call.1} parent=11 // pred_check_branch
          %145 = sbr.rel (%p143) target = $region16
        $region15: #{tpu_custom_call.1} parent=11 // pred_region
          _
        $region16: #{tpu_custom_call.1} parent=11 // pred_fallthru
          _
        // Predicated region
        $region17: #{tpu_custom_call.1} parent=11 // pred_check
          %p146 = pneg %p81
        $region18: #{tpu_custom_call.1} parent=11 // pred_check_branch
          %148 = sbr.rel (%p146) target = $region20
        $region19: #{tpu_custom_call.1} parent=11 // pred_region
          _
        $region20: #{tpu_custom_call.1} parent=11 // pred_fallthru
          _
        // Predicated region
        $region21: #{tpu_custom_call.1} parent=11 // pred_check
          %p149 = pneg %p102
        $region22: #{tpu_custom_call.1} parent=11 // pred_check_branch
          %151 = sbr.rel (%p149) target = $region24
        $region23: #{tpu_custom_call.1} parent=11 // pred_region
          _
        $region24: #{tpu_custom_call.1} parent=11 // pred_fallthru
          _
      $region12: #{tpu_custom_call.1} parent=5 // pred_fallthru
        _
      %p152 = scmp.lt.s32.totalorder %s13, 2
      // Predicated region
      $region25: #{tpu_custom_call.1} parent=5 // pred_check
        %p153 = pneg %p152
      $region26: #{tpu_custom_call.1} parent=5 // pred_check_branch
        %155 = sbr.rel (%p153) target = $region28
      $region27: #{tpu_custom_call.1} parent=5 // pred_region
        // Predicated region
        $region29: #{tpu_custom_call.1} parent=27 // pred_check
          %p156 = pneg %p33
        $region30: #{tpu_custom_call.1} parent=27 // pred_check_branch
          %158 = sbr.rel (%p156) target = $region32
        $region31: #{tpu_custom_call.1} parent=27 // pred_region
          %p159 = scmp.lt.s32.totalorder %s13, 1
          %s160 = scalar_select %p159, %s13, 1
          %s161 = smul.addr %s160, 8
          %s162 = scalar_lea.vmem %s0, %s161
        $region32: #{tpu_custom_call.1} parent=27 // pred_fallthru
          _
      $region28: #{tpu_custom_call.1} parent=5 // pred_fallthru
        _
      %p163 = scmp.le.s32.totalorder 1, %s13
      %p164 = scmp.lt.s32.totalorder %s13, 3
      %p165 = pnand %p163, %p164
      %p166 = pneg %p165
      // Predicated region
      $region33: #{tpu_custom_call.1} parent=5 // pred_check
        _
      $region34: #{tpu_custom_call.1} parent=5 // pred_check_branch
        %168 = sbr.rel (%p165) target = $region36
      $region35: #{tpu_custom_call.1} parent=5 // pred_region
        %s169 = ssub.s32 %s13, 1
        %p170 = scmp.lt.s32.totalorder %s18, 1
        %s171 = scalar_select %p170, %s18, 1
        %s172 = smul.addr %s171, 8
        %s173 = scalar_lea.vmem %s0, %s172
        %p174 = pneg %p39
        %p175 = pneg %p36
        %p176 = pneg %p60
        %p177 = pneg %p57
        %p178 = pneg %p81
        %p179 = pneg %p78
        %p180 = pneg %p102
        %p181 = pneg %p99
        %p182 = pneg %p128
        %p183 = pneg %p125
        %s184 = sand.u32 %s115, 1
        %s185 = scalar_lea.sflag [#allocation3], %s184
        %s186 = sand.u32 %s115, 1
        %s187 = smul.addr %s186, 8
        %s188 = scalar_lea.vmem [#allocation2], %s187
        %p189 = scmp.lt.s32.totalorder %s18, 1
        %s190 = scalar_select %p189, %s18, 1
        %s191 = smul.addr %s190, 8
        %s192 = scalar_lea.vmem %s0, %s191
        %v194 = vld [vmem:[%s192] sm:$0xff]
        %v195 = vpack.c.bf16 %v194, %v194
        %v196 = vld [vmem:[%s1] sm:$0xff]
        %v197 = vld [vmem:[%s1 + $0x8] sm:$0xff]
        %v198 = vld [vmem:[%s1 + $0x10] sm:$0xff]
        %v199 = vld [vmem:[%s1 + $0x18] sm:$0xff]
        %v200 = vpack.c.bf16 %v197, %v196
        %v201 = vpack.c.bf16 %v199, %v198
        %v202 = vld [vmem:[%s2] sm:$0xff]
        %v203 = vld [vmem:[%s2 + $0x8] sm:$0xff]
        %v204 = vld [vmem:[%s2 + $0x10] sm:$0xff]
        %v205 = vld [vmem:[%s2 + $0x18] sm:$0xff]
        %v206 = vpack.c.bf16 %v203, %v202
        %v207 = vpack.c.bf16 %v205, %v204
        %v208 = vld [vmem:[%s3] sm:$0xff]
        %v209 = vld [vmem:[%s3 + $0x8] sm:$0xff]
        %v210 = vld [vmem:[%s3 + $0x10] sm:$0xff]
        %v211 = vld [vmem:[%s3 + $0x18] sm:$0xff]
        %v212 = vpack.c.bf16 %v209, %v208
        %v213 = vpack.c.bf16 %v211, %v210
        %vm214 = vcmask 261120
        %v216 = vsel %vm214, %v195, 0
        %218 = vmatpush.bf16.msra.mxu0 0
        %219 = vmatpush.bf16.msra.mxu0 0
        %220 = vmatpush.bf16.msra.mxu0 0
        %221 = vmatpush.bf16.msra.mxu0 0
        %222 = vmatpush.bf16.msra.mxu0 0
        %223 = vmatpush.bf16.msra.mxu0 0
        %224 = vmatpush.bf16.msra.mxu0 %v201
        %225 = vmatpush.bf16.msra.mxu0 %v200
        %226 = vmatmul.bf16.gmra.mxu0 %v216
        %v227 = vpop.f32.mrf.mxu0
        %v228 = vadd.f32 0.0, %v227
        %v229 = vpop.f32.mrf.mxu0
        %230 = vdwg.mxu0
        %231 = vmatpush.bf16.msra.mxu0 0
        %232 = vmatpush.bf16.msra.mxu0 0
        %233 = vmatpush.bf16.msra.mxu0 0
        %234 = vmatpush.bf16.msra.mxu0 0
        %235 = vmatpush.bf16.msra.mxu0 0
        %236 = vmatpush.bf16.msra.mxu0 0
        %237 = vmatpush.bf16.msra.mxu0 %v207
        %238 = vmatpush.bf16.msra.mxu0 %v206
        %239 = vmatmul.bf16.gmra.mxu0 %v216
        %v240 = vpop.f32.mrf.mxu0
        %v241 = vadd.f32 0.0, %v240
        %v242 = vpop.f32.mrf.mxu0
        %243 = vdwg.mxu0
        %244 = vmatpush.bf16.msra.mxu0 0
        %245 = vmatpush.bf16.msra.mxu0 0
        %246 = vmatpush.bf16.msra.mxu0 0
        %247 = vmatpush.bf16.msra.mxu0 0
        %248 = vmatpush.bf16.msra.mxu0 0
        %249 = vmatpush.bf16.msra.mxu0 0
        %250 = vmatpush.bf16.msra.mxu0 %v213
        %251 = vmatpush.bf16.msra.mxu0 %v212
        %252 = vmatmul.bf16.gmra.mxu0 %v216
        %v253 = vpop.f32.mrf.mxu0
        %v254 = vadd.f32 0.0, %v253
        %v255 = vpop.f32.mrf.mxu0
        %256 = vdwg.mxu0
        %v257 = vpack.c.bf16 %v228, %v228
        %v258 = vpack.c.bf16 %v241, %v241
        %v259 = vpack.c.bf16 %v254, %v254
        %vm260 = vcmask 130048
        %v262 = vsel %vm260, %v257, 0
        %v265 = vsel %vm260, %v258, 0
        %267 = vmatpush.bf16.xpose.msra.mxu0 0
        %268 = vmatpush.bf16.xpose.msra.mxu0 0
        %269 = vmatpush.bf16.xpose.msra.mxu0 0
        %270 = vmatpush.bf16.xpose.msra.mxu0 0
        %271 = vmatpush.bf16.xpose.msra.mxu0 0
        %272 = vmatpush.bf16.xpose.msra.mxu0 0
        %273 = vmatpush.bf16.xpose.msra.mxu0 0
        %274 = vmatpush.bf16.xpose.msra.mxu0 %v265
        %275 = vmatmul.bf16.gmra.mxu0 %v262
        %v276 = vpop.f32.mrf.mxu0
        %v277 = vadd.f32 0.0, %v276
        %v278 = vpop.f32.mrf.mxu0
        %279 = vdwg.mxu0
        %v280 = vmul.f32 %v277, 0.25
        %v281 = vlaneseq
        %v282 = vshrl.u32 %v281, 7
        %v283 = vlaneseq
        %v284 = vand.u32 %v283, 127
        %vm285 = vcmp.le.s32.totalorder %v284, %v282
        %v286 = vsel %vm285, %v280, -2.3819763e+38
        %vm287 = vcmask 64512
        %v288 = vsel %vm287, %v286, -inf
        %289 = vmax.xlane.f32.xlu0 %v288
        %v290 = vpop.xlane.xlu0 %289
        %v291 = vsub.f32 %v286, %v290
        %v292 = vmul.f32 %v291, 1.442695
        %v293 = vpow.pop %v292
        %v294 = vsel %vm287, %v293, 0.0
        %295 = vadd.xlane.f32.xlu0 %v294
        %v296 = vpop.xlane.xlu0 %295
        %v297 = vrcp.pop %v296
        %v298 = vmul.f32 %v293, %v297
        %v299 = vpack.c.bf16 %v298, %v298
        %v301 = vsel %vm287, %v299, 0
        %vm303 = vcmask 1043456
        %v305 = vsel %vm303, %v259, 0
        %307 = vmatpush.bf16.msra.mxu0 0
        %308 = vmatpush.bf16.msra.mxu0 0
        %309 = vmatpush.bf16.msra.mxu0 0
        %310 = vmatpush.bf16.msra.mxu0 0
        %311 = vmatpush.bf16.msra.mxu0 0
        %312 = vmatpush.bf16.msra.mxu0 0
        %313 = vmatpush.bf16.msra.mxu0 0
        %314 = vmatpush.bf16.msra.mxu0 %v305
        %315 = vmatmul.bf16.gmra.mxu0 %v301
        %v316 = vpop.f32.mrf.mxu0
        %v317 = vadd.f32 0.0, %v316
        %v318 = vpop.f32.mrf.mxu0
        %319 = vdwg.mxu0
        %320 = vst.msk [vmem:[%s188] sm:$0xff] %vm260, %v317
        %s321 = sand.u32 %s115, 1
        %s322 = scalar_lea.sflag [#allocation3], %s321
        %s323 = sand.u32 %s115, 1
        %s324 = smul.addr %s323, 8
        %s325 = scalar_lea.vmem [#allocation2], %s324
        // Predicated region
        $region37: #{tpu_custom_call.1} parent=35 // pred_check
          %p326 = pneg %p125
        $region38: #{tpu_custom_call.1} parent=35 // pred_check_branch
          %328 = sbr.rel (%p326) target = $region40
        $region39: #{tpu_custom_call.1} parent=35 // pred_region
          %330 = vsyncadd %s322, 0
          %s331 = smul.addr %s18, 8
          %s332 = scalar_lea.hbm %s4, %s331
          %s334 = sshll.u32 %s325, 4
          %s335 = int_to_ptr.vmem [resolvable:$true] %s334
          %s336 = sshll.u32 %s332, 4
          %s337 = int_to_ptr.hbm [resolvable:$true] %s336
          %339 = dma.vmem_to_hbm [thread:$0]  %s335, 128, %s337, %s322
        $region40: #{tpu_custom_call.1} parent=35 // pred_fallthru
          _
      $region36: #{tpu_custom_call.1} parent=5 // pred_fallthru
        _
      %p340 = scmp.le.s32.totalorder 2, %s13
      // Predicated region
      $region41: #{tpu_custom_call.1} parent=5 // pred_check
        %p341 = pneg %p340
      $region42: #{tpu_custom_call.1} parent=5 // pred_check_branch
        %343 = sbr.rel (%p341) target = $region44
      $region43: #{tpu_custom_call.1} parent=5 // pred_region
        %s344 = ssub.s32 %s13, 2
        // Predicated region
        $region45: #{tpu_custom_call.1} parent=43 // pred_check
          %p345 = pneg %p131
        $region46: #{tpu_custom_call.1} parent=43 // pred_check_branch
          %347 = sbr.rel (%p345) target = $region48
        $region47: #{tpu_custom_call.1} parent=43 // pred_region
          %s348 = sand.u32 %s116, 1
          %s349 = scalar_lea.sflag [#allocation3], %s348
          %s350 = sand.u32 %s116, 1
          %s351 = smul.addr %s350, 8
          %s352 = scalar_lea.vmem [#allocation2], %s351
          %354 = dma.done %s349, 128
        $region48: #{tpu_custom_call.1} parent=43 // pred_fallthru
          _
      $region44: #{tpu_custom_call.1} parent=5 // pred_fallthru
        _
    $region6: #{tpu_custom_call.1} parent=1 // loop_footer
      %s17 = sadd.s32 1, %s13
    $region7: #{tpu_custom_call.1} parent=1 // loop_footer_branch
      %12 = sbr.rel target = $region3
    $region8: #{tpu_custom_call.1} parent=1 // loop_exit
      _
    %355 = vsyncpa [#allocation3], 1
    %s356 = scalar_lea.sflag [#allocation3], 1
    %357 = vsyncpa %s356, 1

</llo_original>
